<compile_context>
chip_gen: v7x
topology: tpu7x:2x2x1
jax: 0.10.0
libtpu: 0.0.40
codegen_flags: <defaults>
</compile_context>

<pallas_src>
import functools

import jax
import jax.numpy as jnp
from jax import lax
from jax.experimental import pallas as pl
from jax.experimental.pallas import tpu as pltpu


def decoder_kernel(x_ref, wih_t_ref, whh_t_ref, b_ref,
                   wlin_t_ref, blin_ref, wcls_t_ref, bcls_ref,
                   out_ref, cls_ref, *, seq):
    """Single-layer LSTM (PyTorch gate order i,f,g,o) + two output Linears.

    x_ref      : (B, H)         the (repeated) input vector per batch element
    wih_t_ref  : (H, 4H)        W_ih transposed
    whh_t_ref  : (H, 4H)        W_hh transposed
    b_ref      : (1, 4H)        b_ih + b_hh
    wlin_t_ref : (H, O)         self.linear weight transposed
    blin_ref   : (1, O)
    wcls_t_ref : (H, 10)        self.linearClass weight transposed
    bcls_ref   : (1, 10)
    out_ref    : (seq*B, O)     row t*B+b = linear(h_t[b])  (reshaped in wrapper)
    cls_ref    : (B, 10)        linearClass(final hidden)
    """
    B, H = x_ref.shape

    x = x_ref[...]
    # Loop-invariant loads hoisted out of the recurrence (stay vreg-resident).
    whh_t = whh_t_ref[...]
    # Input is identical at every timestep (x.repeat along seq), so the input
    # projection + bias is hoisted out of the recurrence.
    x_proj = jnp.dot(x, wih_t_ref[...],
                     preferred_element_type=jnp.float32) + b_ref[...]

    h = jnp.zeros((B, H), jnp.float32)
    c = jnp.zeros((B, H), jnp.float32)
    h_list = []
    # seq is static and small -> full unroll; h/c live in vregs the whole time.
    for _ in range(seq):
        gates = x_proj + jnp.dot(h, whh_t, preferred_element_type=jnp.float32)
        # Full-slab nonlinearities over (B, 4H): 2 EUP pushes instead of 4.
        sg = jax.nn.sigmoid(gates)
        tg = jnp.tanh(gates)
        i_g = sg[:, 0 * H:1 * H]
        f_g = sg[:, 1 * H:2 * H]
        g_g = tg[:, 2 * H:3 * H]
        o_g = sg[:, 3 * H:4 * H]
        c = f_g * c + i_g * g_g
        h = o_g * jnp.tanh(c)
        h_list.append(h)

    # One batched output projection + single store (instead of seq tiny
    # matmuls with masked per-step stores inside the serial loop).
    hs = jnp.concatenate(h_list, axis=0)                      # (seq*B, H)
    y = jnp.dot(hs, wlin_t_ref[...],
                preferred_element_type=jnp.float32) + blin_ref[...]
    out_ref[...] = y.astype(out_ref.dtype)

    cls_ref[...] = (jnp.dot(h, wcls_t_ref[...],
                            preferred_element_type=jnp.float32)
                    + bcls_ref[...]).astype(cls_ref.dtype)


def init_params(key, hs_size, output_size, class_size=10):
    """Deterministic PyTorch-style uniform init for LSTM + two Linears."""
    ks = jax.random.split(key, 8)
    k_lstm = 1.0 / jnp.sqrt(hs_size)
    k_lin = 1.0 / jnp.sqrt(hs_size)
    u = lambda k, shape, b: jax.random.uniform(k, shape, jnp.float32, -b, b)
    return dict(
        w_ih=u(ks[0], (4 * hs_size, hs_size), k_lstm),
        w_hh=u(ks[1], (4 * hs_size, hs_size), k_lstm),
        b_ih=u(ks[2], (4 * hs_size,), k_lstm),
        b_hh=u(ks[3], (4 * hs_size,), k_lstm),
        w_lin=u(ks[4], (output_size, hs_size), k_lin),
        b_lin=u(ks[5], (output_size,), k_lin),
        w_cls=u(ks[6], (class_size, hs_size), k_lin),
        b_cls=u(ks[7], (class_size,), k_lin),
    )


@functools.partial(jax.jit, static_argnames=("seq_size",))
def decoder_forward(x, params, seq_size):
    """x: (B, 1, H)  ->  (output (B, seq, O), class (1, B, 10))."""
    B, _, H = x.shape
    O = params["w_lin"].shape[0]
    C = params["w_cls"].shape[0]

    x2 = x.reshape(B, H).astype(jnp.float32)
    wih_t = params["w_ih"].T                       # (H, 4H)
    whh_t = params["w_hh"].T                       # (H, 4H)
    b = (params["b_ih"] + params["b_hh"]).reshape(1, 4 * H)
    wlin_t = params["w_lin"].T                     # (H, O)
    blin = params["b_lin"].reshape(1, O)
    wcls_t = params["w_cls"].T                     # (H, C)
    bcls = params["b_cls"].reshape(1, C)

    # Footprint is tiny (<0.1 MiB): keep everything VMEM-resident, no grid.
    vmem = pl.BlockSpec(memory_space=pltpu.MemorySpace.VMEM)
    out_flat, cls = pl.pallas_call(
        functools.partial(decoder_kernel, seq=seq_size),
        out_shape=(jax.ShapeDtypeStruct((seq_size * B, O), jnp.float32),
                   jax.ShapeDtypeStruct((B, C), jnp.float32)),
        in_specs=[vmem] * 8,
        out_specs=(vmem, vmem),
    )(x2, wih_t, whh_t, b, wlin_t, blin, wcls_t, bcls)

    # Layout glue back to PyTorch conventions (outside the kernel).
    output = jnp.transpose(out_flat.reshape(seq_size, B, O), (1, 0, 2))
    class_out = cls[None, :, :]                    # (1, B, 10) == linearClass(hidden)
    return output, class_out
    # TODO(synk): nn.LSTM(dropout=...) with num_layers=1 applies no dropout, so it is omitted.


def decoder_reference(x, params, seq_size):
    """Pure-JAX reference (lax.scan LSTM) for correctness checking."""
    B, _, H = x.shape
    xt = x.reshape(B, H).astype(jnp.float32)
    b = params["b_ih"] + params["b_hh"]

    def cell(carry, _):
        h, c = carry
        gates = xt @ params["w_ih"].T + h @ params["w_hh"].T + b
        i_g = jax.nn.sigmoid(gates[:, 0:H])
        f_g = jax.nn.sigmoid(gates[:, H:2 * H])
        g_g = jnp.tanh(gates[:, 2 * H:3 * H])
        o_g = jax.nn.sigmoid(gates[:, 3 * H:4 * H])
        c_new = f_g * c + i_g * g_g
        h_new = o_g * jnp.tanh(c_new)
        return (h_new, c_new), h_new

    (h_last, _), hs = lax.scan(cell, (jnp.zeros((B, H)), jnp.zeros((B, H))),
                               None, length=seq_size)
    output = jnp.transpose(hs, (1, 0, 2)) @ params["w_lin"].T + params["b_lin"]
    cls = (h_last @ params["w_cls"].T + params["b_cls"])[None]
    return output, cls


if __name__ == "__main__":
    B, hs_size, seq_size, output_size = 2, 32, 8, 16
    key = jax.random.PRNGKey(0)
    kx, kp = jax.random.split(key)
    x = jax.random.normal(kx, (B, 1, hs_size), dtype=jnp.float32)
    params = init_params(kp, hs_size, output_size)

    out, cls = decoder_forward(x, params, seq_size)
    jax.block_until_ready((out, cls))

    ref_out, ref_cls = decoder_reference(x, params, seq_size)
    assert out.shape == (B, seq_size, output_size)
    assert cls.shape == (1, B, 10)
    assert jnp.allclose(out, ref_out, atol=1e-5, rtol=1e-5)
    assert jnp.allclose(cls, ref_cls, atol=1e-5, rtol=1e-5)
    print("KERNEL_OK")
</pallas_src>

<mosaic_0001>
module attributes {stable_mosaic.version = 11 : i64} {
  func.func @decoder_kernel(%arg0: memref<2x32xf32, #tpu.memory_space<vmem>>, %arg1: memref<32x128xf32, #tpu.memory_space<vmem>>, %arg2: memref<32x128xf32, #tpu.memory_space<vmem>>, %arg3: memref<1x128xf32, #tpu.memory_space<vmem>>, %arg4: memref<32x16xf32, #tpu.memory_space<vmem>>, %arg5: memref<1x16xf32, #tpu.memory_space<vmem>>, %arg6: memref<32x10xf32, #tpu.memory_space<vmem>>, %arg7: memref<1x10xf32, #tpu.memory_space<vmem>>, %arg8: memref<16x16xf32, #tpu.memory_space<vmem>>, %arg9: memref<2x10xf32, #tpu.memory_space<vmem>>) attributes {dimension_semantics = [], scalar_prefetch = 0 : i64, scratch_operands = 0 : i64, tpu.core_type = #tpu.core_type<tc>} {
    %c0 = arith.constant 0 : index
    %c0_0 = arith.constant 0 : index
    %0 = vector.load %arg0[%c0, %c0_0] : memref<2x32xf32, #tpu.memory_space<vmem>>, vector<2x32xf32>
    %c0_1 = arith.constant 0 : index
    %c0_2 = arith.constant 0 : index
    %1 = vector.load %arg2[%c0_1, %c0_2] : memref<32x128xf32, #tpu.memory_space<vmem>>, vector<32x128xf32>
    %c0_3 = arith.constant 0 : index
    %c0_4 = arith.constant 0 : index
    %2 = vector.load %arg1[%c0_3, %c0_4] : memref<32x128xf32, #tpu.memory_space<vmem>>, vector<32x128xf32>
    %cst = arith.constant dense<0.000000e+00> : vector<2x128xf32>
    %3 = tpu.matmul %0, %2, %cst {dimension_numbers = #tpu.dot_dimension_numbers<[1], [0], [0], [1], [0, 0, 1, 1], [], []>} : vector<2x32xf32>, vector<32x128xf32>, vector<2x128xf32> -> vector<2x128xf32>
    %c0_5 = arith.constant 0 : index
    %c0_6 = arith.constant 0 : index
    %4 = vector.load %arg3[%c0_5, %c0_6] : memref<1x128xf32, #tpu.memory_space<vmem>>, vector<1x128xf32>
    %5 = vector.broadcast %4 : vector<1x128xf32> to vector<2x128xf32>
    %6 = arith.addf %3, %5 : vector<2x128xf32>
    %cst_7 = arith.constant 0.000000e+00 : f32
    %7 = vector.broadcast %cst_7 : f32 to vector<2x32xf32>
    %cst_8 = arith.constant 0.000000e+00 : f32
    %8 = vector.broadcast %cst_8 : f32 to vector<2x32xf32>
    %cst_9 = arith.constant dense<0.000000e+00> : vector<2x128xf32>
    %9 = tpu.matmul %7, %1, %cst_9 {dimension_numbers = #tpu.dot_dimension_numbers<[1], [0], [0], [1], [0, 0, 1, 1], [], []>} : vector<2x32xf32>, vector<32x128xf32>, vector<2x128xf32> -> vector<2x128xf32>
    %10 = arith.addf %6, %9 : vector<2x128xf32>
    %11 = arith.negf %10 : vector<2x128xf32>
    %12 = math.exp %11 : vector<2x128xf32>
    %cst_10 = arith.constant 1.000000e+00 : f32
    %13 = vector.broadcast %cst_10 : f32 to vector<2x128xf32>
    %14 = arith.addf %13, %12 : vector<2x128xf32>
    %15 = arith.divf %13, %14 : vector<2x128xf32>
    %16 = math.tanh %10 : vector<2x128xf32>
    %17 = vector.extract_strided_slice %15 {offsets = [0, 0], sizes = [2, 32], strides = [1, 1]} : vector<2x128xf32> to vector<2x32xf32>
    %18 = vector.extract_strided_slice %15 {offsets = [0, 32], sizes = [2, 32], strides = [1, 1]} : vector<2x128xf32> to vector<2x32xf32>
    %19 = vector.extract_strided_slice %16 {offsets = [0, 64], sizes = [2, 32], strides = [1, 1]} : vector<2x128xf32> to vector<2x32xf32>
    %20 = vector.extract_strided_slice %15 {offsets = [0, 96], sizes = [2, 32], strides = [1, 1]} : vector<2x128xf32> to vector<2x32xf32>
    %21 = arith.mulf %18, %8 : vector<2x32xf32>
    %22 = arith.mulf %17, %19 : vector<2x32xf32>
    %23 = arith.addf %21, %22 : vector<2x32xf32>
    %24 = math.tanh %23 : vector<2x32xf32>
    %25 = arith.mulf %20, %24 : vector<2x32xf32>
    %cst_11 = arith.constant dense<0.000000e+00> : vector<2x128xf32>
    %26 = tpu.matmul %25, %1, %cst_11 {dimension_numbers = #tpu.dot_dimension_numbers<[1], [0], [0], [1], [0, 0, 1, 1], [], []>} : vector<2x32xf32>, vector<32x128xf32>, vector<2x128xf32> -> vector<2x128xf32>
    %27 = arith.addf %6, %26 : vector<2x128xf32>
    %28 = arith.negf %27 : vector<2x128xf32>
    %29 = math.exp %28 : vector<2x128xf32>
    %cst_12 = arith.constant 1.000000e+00 : f32
    %30 = vector.broadcast %cst_12 : f32 to vector<2x128xf32>
    %31 = arith.addf %30, %29 : vector<2x128xf32>
    %32 = arith.divf %30, %31 : vector<2x128xf32>
    %33 = math.tanh %27 : vector<2x128xf32>
    %34 = vector.extract_strided_slice %32 {offsets = [0, 0], sizes = [2, 32], strides = [1, 1]} : vector<2x128xf32> to vector<2x32xf32>
    %35 = vector.extract_strided_slice %32 {offsets = [0, 32], sizes = [2, 32], strides = [1, 1]} : vector<2x128xf32> to vector<2x32xf32>
    %36 = vector.extract_strided_slice %33 {offsets = [0, 64], sizes = [2, 32], strides = [1, 1]} : vector<2x128xf32> to vector<2x32xf32>
    %37 = vector.extract_strided_slice %32 {offsets = [0, 96], sizes = [2, 32], strides = [1, 1]} : vector<2x128xf32> to vector<2x32xf32>
    %38 = arith.mulf %35, %23 : vector<2x32xf32>
    %39 = arith.mulf %34, %36 : vector<2x32xf32>
    %40 = arith.addf %38, %39 : vector<2x32xf32>
    %41 = math.tanh %40 : vector<2x32xf32>
    %42 = arith.mulf %37, %41 : vector<2x32xf32>
    %cst_13 = arith.constant dense<0.000000e+00> : vector<2x128xf32>
    %43 = tpu.matmul %42, %1, %cst_13 {dimension_numbers = #tpu.dot_dimension_numbers<[1], [0], [0], [1], [0, 0, 1, 1], [], []>} : vector<2x32xf32>, vector<32x128xf32>, vector<2x128xf32> -> vector<2x128xf32>
    %44 = arith.addf %6, %43 : vector<2x128xf32>
    %45 = arith.negf %44 : vector<2x128xf32>
    %46 = math.exp %45 : vector<2x128xf32>
    %cst_14 = arith.constant 1.000000e+00 : f32
    %47 = vector.broadcast %cst_14 : f32 to vector<2x128xf32>
    %48 = arith.addf %47, %46 : vector<2x128xf32>
    %49 = arith.divf %47, %48 : vector<2x128xf32>
    %50 = math.tanh %44 : vector<2x128xf32>
    %51 = vector.extract_strided_slice %49 {offsets = [0, 0], sizes = [2, 32], strides = [1, 1]} : vector<2x128xf32> to vector<2x32xf32>
    %52 = vector.extract_strided_slice %49 {offsets = [0, 32], sizes = [2, 32], strides = [1, 1]} : vector<2x128xf32> to vector<2x32xf32>
    %53 = vector.extract_strided_slice %50 {offsets = [0, 64], sizes = [2, 32], strides = [1, 1]} : vector<2x128xf32> to vector<2x32xf32>
    %54 = vector.extract_strided_slice %49 {offsets = [0, 96], sizes = [2, 32], strides = [1, 1]} : vector<2x128xf32> to vector<2x32xf32>
    %55 = arith.mulf %52, %40 : vector<2x32xf32>
    %56 = arith.mulf %51, %53 : vector<2x32xf32>
    %57 = arith.addf %55, %56 : vector<2x32xf32>
    %58 = math.tanh %57 : vector<2x32xf32>
    %59 = arith.mulf %54, %58 : vector<2x32xf32>
    %cst_15 = arith.constant dense<0.000000e+00> : vector<2x128xf32>
    %60 = tpu.matmul %59, %1, %cst_15 {dimension_numbers = #tpu.dot_dimension_numbers<[1], [0], [0], [1], [0, 0, 1, 1], [], []>} : vector<2x32xf32>, vector<32x128xf32>, vector<2x128xf32> -> vector<2x128xf32>
    %61 = arith.addf %6, %60 : vector<2x128xf32>
    %62 = arith.negf %61 : vector<2x128xf32>
    %63 = math.exp %62 : vector<2x128xf32>
    %cst_16 = arith.constant 1.000000e+00 : f32
    %64 = vector.broadcast %cst_16 : f32 to vector<2x128xf32>
    %65 = arith.addf %64, %63 : vector<2x128xf32>
    %66 = arith.divf %64, %65 : vector<2x128xf32>
    %67 = math.tanh %61 : vector<2x128xf32>
    %68 = vector.extract_strided_slice %66 {offsets = [0, 0], sizes = [2, 32], strides = [1, 1]} : vector<2x128xf32> to vector<2x32xf32>
    %69 = vector.extract_strided_slice %66 {offsets = [0, 32], sizes = [2, 32], strides = [1, 1]} : vector<2x128xf32> to vector<2x32xf32>
    %70 = vector.extract_strided_slice %67 {offsets = [0, 64], sizes = [2, 32], strides = [1, 1]} : vector<2x128xf32> to vector<2x32xf32>
    %71 = vector.extract_strided_slice %66 {offsets = [0, 96], sizes = [2, 32], strides = [1, 1]} : vector<2x128xf32> to vector<2x32xf32>
    %72 = arith.mulf %69, %57 : vector<2x32xf32>
    %73 = arith.mulf %68, %70 : vector<2x32xf32>
    %74 = arith.addf %72, %73 : vector<2x32xf32>
    %75 = math.tanh %74 : vector<2x32xf32>
    %76 = arith.mulf %71, %75 : vector<2x32xf32>
    %cst_17 = arith.constant dense<0.000000e+00> : vector<2x128xf32>
    %77 = tpu.matmul %76, %1, %cst_17 {dimension_numbers = #tpu.dot_dimension_numbers<[1], [0], [0], [1], [0, 0, 1, 1], [], []>} : vector<2x32xf32>, vector<32x128xf32>, vector<2x128xf32> -> vector<2x128xf32>
    %78 = arith.addf %6, %77 : vector<2x128xf32>
    %79 = arith.negf %78 : vector<2x128xf32>
    %80 = math.exp %79 : vector<2x128xf32>
    %cst_18 = arith.constant 1.000000e+00 : f32
    %81 = vector.broadcast %cst_18 : f32 to vector<2x128xf32>
    %82 = arith.addf %81, %80 : vector<2x128xf32>
    %83 = arith.divf %81, %82 : vector<2x128xf32>
    %84 = math.tanh %78 : vector<2x128xf32>
    %85 = vector.extract_strided_slice %83 {offsets = [0, 0], sizes = [2, 32], strides = [1, 1]} : vector<2x128xf32> to vector<2x32xf32>
    %86 = vector.extract_strided_slice %83 {offsets = [0, 32], sizes = [2, 32], strides = [1, 1]} : vector<2x128xf32> to vector<2x32xf32>
    %87 = vector.extract_strided_slice %84 {offsets = [0, 64], sizes = [2, 32], strides = [1, 1]} : vector<2x128xf32> to vector<2x32xf32>
    %88 = vector.extract_strided_slice %83 {offsets = [0, 96], sizes = [2, 32], strides = [1, 1]} : vector<2x128xf32> to vector<2x32xf32>
    %89 = arith.mulf %86, %74 : vector<2x32xf32>
    %90 = arith.mulf %85, %87 : vector<2x32xf32>
    %91 = arith.addf %89, %90 : vector<2x32xf32>
    %92 = math.tanh %91 : vector<2x32xf32>
    %93 = arith.mulf %88, %92 : vector<2x32xf32>
    %cst_19 = arith.constant dense<0.000000e+00> : vector<2x128xf32>
    %94 = tpu.matmul %93, %1, %cst_19 {dimension_numbers = #tpu.dot_dimension_numbers<[1], [0], [0], [1], [0, 0, 1, 1], [], []>} : vector<2x32xf32>, vector<32x128xf32>, vector<2x128xf32> -> vector<2x128xf32>
    %95 = arith.addf %6, %94 : vector<2x128xf32>
    %96 = arith.negf %95 : vector<2x128xf32>
    %97 = math.exp %96 : vector<2x128xf32>
    %cst_20 = arith.constant 1.000000e+00 : f32
    %98 = vector.broadcast %cst_20 : f32 to vector<2x128xf32>
    %99 = arith.addf %98, %97 : vector<2x128xf32>
    %100 = arith.divf %98, %99 : vector<2x128xf32>
    %101 = math.tanh %95 : vector<2x128xf32>
    %102 = vector.extract_strided_slice %100 {offsets = [0, 0], sizes = [2, 32], strides = [1, 1]} : vector<2x128xf32> to vector<2x32xf32>
    %103 = vector.extract_strided_slice %100 {offsets = [0, 32], sizes = [2, 32], strides = [1, 1]} : vector<2x128xf32> to vector<2x32xf32>
    %104 = vector.extract_strided_slice %101 {offsets = [0, 64], sizes = [2, 32], strides = [1, 1]} : vector<2x128xf32> to vector<2x32xf32>
    %105 = vector.extract_strided_slice %100 {offsets = [0, 96], sizes = [2, 32], strides = [1, 1]} : vector<2x128xf32> to vector<2x32xf32>
    %106 = arith.mulf %103, %91 : vector<2x32xf32>
    %107 = arith.mulf %102, %104 : vector<2x32xf32>
    %108 = arith.addf %106, %107 : vector<2x32xf32>
    %109 = math.tanh %108 : vector<2x32xf32>
    %110 = arith.mulf %105, %109 : vector<2x32xf32>
    %cst_21 = arith.constant dense<0.000000e+00> : vector<2x128xf32>
    %111 = tpu.matmul %110, %1, %cst_21 {dimension_numbers = #tpu.dot_dimension_numbers<[1], [0], [0], [1], [0, 0, 1, 1], [], []>} : vector<2x32xf32>, vector<32x128xf32>, vector<2x128xf32> -> vector<2x128xf32>
    %112 = arith.addf %6, %111 : vector<2x128xf32>
    %113 = arith.negf %112 : vector<2x128xf32>
    %114 = math.exp %113 : vector<2x128xf32>
    %cst_22 = arith.constant 1.000000e+00 : f32
    %115 = vector.broadcast %cst_22 : f32 to vector<2x128xf32>
    %116 = arith.addf %115, %114 : vector<2x128xf32>
    %117 = arith.divf %115, %116 : vector<2x128xf32>
    %118 = math.tanh %112 : vector<2x128xf32>
    %119 = vector.extract_strided_slice %117 {offsets = [0, 0], sizes = [2, 32], strides = [1, 1]} : vector<2x128xf32> to vector<2x32xf32>
    %120 = vector.extract_strided_slice %117 {offsets = [0, 32], sizes = [2, 32], strides = [1, 1]} : vector<2x128xf32> to vector<2x32xf32>
    %121 = vector.extract_strided_slice %118 {offsets = [0, 64], sizes = [2, 32], strides = [1, 1]} : vector<2x128xf32> to vector<2x32xf32>
    %122 = vector.extract_strided_slice %117 {offsets = [0, 96], sizes = [2, 32], strides = [1, 1]} : vector<2x128xf32> to vector<2x32xf32>
    %123 = arith.mulf %120, %108 : vector<2x32xf32>
    %124 = arith.mulf %119, %121 : vector<2x32xf32>
    %125 = arith.addf %123, %124 : vector<2x32xf32>
    %126 = math.tanh %125 : vector<2x32xf32>
    %127 = arith.mulf %122, %126 : vector<2x32xf32>
    %cst_23 = arith.constant dense<0.000000e+00> : vector<2x128xf32>
    %128 = tpu.matmul %127, %1, %cst_23 {dimension_numbers = #tpu.dot_dimension_numbers<[1], [0], [0], [1], [0, 0, 1, 1], [], []>} : vector<2x32xf32>, vector<32x128xf32>, vector<2x128xf32> -> vector<2x128xf32>
    %129 = arith.addf %6, %128 : vector<2x128xf32>
    %130 = arith.negf %129 : vector<2x128xf32>
    %131 = math.exp %130 : vector<2x128xf32>
    %cst_24 = arith.constant 1.000000e+00 : f32
    %132 = vector.broadcast %cst_24 : f32 to vector<2x128xf32>
    %133 = arith.addf %132, %131 : vector<2x128xf32>
    %134 = arith.divf %132, %133 : vector<2x128xf32>
    %135 = math.tanh %129 : vector<2x128xf32>
    %136 = vector.extract_strided_slice %134 {offsets = [0, 0], sizes = [2, 32], strides = [1, 1]} : vector<2x128xf32> to vector<2x32xf32>
    %137 = vector.extract_strided_slice %134 {offsets = [0, 32], sizes = [2, 32], strides = [1, 1]} : vector<2x128xf32> to vector<2x32xf32>
    %138 = vector.extract_strided_slice %135 {offsets = [0, 64], sizes = [2, 32], strides = [1, 1]} : vector<2x128xf32> to vector<2x32xf32>
    %139 = vector.extract_strided_slice %134 {offsets = [0, 96], sizes = [2, 32], strides = [1, 1]} : vector<2x128xf32> to vector<2x32xf32>
    %140 = arith.mulf %137, %125 : vector<2x32xf32>
    %141 = arith.mulf %136, %138 : vector<2x32xf32>
    %142 = arith.addf %140, %141 : vector<2x32xf32>
    %143 = math.tanh %142 : vector<2x32xf32>
    %144 = arith.mulf %139, %143 : vector<2x32xf32>
    %145 = tpu.concatenate %25, %42, %59, %76, %93, %110, %127, %144 in 0 : vector<2x32xf32>, vector<2x32xf32>, vector<2x32xf32>, vector<2x32xf32>, vector<2x32xf32>, vector<2x32xf32>, vector<2x32xf32>, vector<2x32xf32> -> vector<16x32xf32>
    %c0_25 = arith.constant 0 : index
    %c0_26 = arith.constant 0 : index
    %146 = vector.load %arg4[%c0_25, %c0_26] : memref<32x16xf32, #tpu.memory_space<vmem>>, vector<32x16xf32>
    %cst_27 = arith.constant dense<0.000000e+00> : vector<16x16xf32>
    %147 = tpu.matmul %145, %146, %cst_27 {dimension_numbers = #tpu.dot_dimension_numbers<[1], [0], [0], [1], [0, 0, 1, 1], [], []>} : vector<16x32xf32>, vector<32x16xf32>, vector<16x16xf32> -> vector<16x16xf32>
    %c0_28 = arith.constant 0 : index
    %c0_29 = arith.constant 0 : index
    %148 = vector.load %arg5[%c0_28, %c0_29] : memref<1x16xf32, #tpu.memory_space<vmem>>, vector<1x16xf32>
    %149 = vector.broadcast %148 : vector<1x16xf32> to vector<16x16xf32>
    %150 = arith.addf %147, %149 : vector<16x16xf32>
    %c0_30 = arith.constant 0 : index
    %c0_31 = arith.constant 0 : index
    %151 = vector.load %arg8[%c0_30, %c0_31] : memref<16x16xf32, #tpu.memory_space<vmem>>, vector<16x16xf32>
    tpu.vector_store %arg8[%c0_30, %c0_31], %150 {strides = array<i32>} : memref<16x16xf32, #tpu.memory_space<vmem>>, vector<16x16xf32>,
    %c0_32 = arith.constant 0 : index
    %c0_33 = arith.constant 0 : index
    %152 = vector.load %arg6[%c0_32, %c0_33] : memref<32x10xf32, #tpu.memory_space<vmem>>, vector<32x10xf32>
    %cst_34 = arith.constant dense<0.000000e+00> : vector<2x10xf32>
    %153 = tpu.matmul %144, %152, %cst_34 {dimension_numbers = #tpu.dot_dimension_numbers<[1], [0], [0], [1], [0, 0, 1, 1], [], []>} : vector<2x32xf32>, vector<32x10xf32>, vector<2x10xf32> -> vector<2x10xf32>
    %c0_35 = arith.constant 0 : index
    %c0_36 = arith.constant 0 : index
    %154 = vector.load %arg7[%c0_35, %c0_36] : memref<1x10xf32, #tpu.memory_space<vmem>>, vector<1x10xf32>
    %155 = vector.broadcast %154 : vector<1x10xf32> to vector<2x10xf32>
    %156 = arith.addf %153, %155 : vector<2x10xf32>
    %c0_37 = arith.constant 0 : index
    %c0_38 = arith.constant 0 : index
    %157 = vector.load %arg9[%c0_37, %c0_38] : memref<2x10xf32, #tpu.memory_space<vmem>>, vector<2x10xf32>
    tpu.vector_store %arg9[%c0_37, %c0_38], %156 {strides = array<i32>} : memref<2x10xf32, #tpu.memory_space<vmem>>, vector<2x10xf32>,
    return
  }
}

</mosaic_0001>

<llo_original>
// kernel: decoder_forward.1
$region0: #{decoder_forward.1}
  #allocation0 [shape = 'u32[]', space=smem, size = 0x4, offset = 0x4, fixed_abs, tag = 'smem constant byte address 0x4 - core index']
  #allocation1 [shape = 'u32[144,128]{1,0:T(1,128)}', space=vmem, size = 0x12000, scoped, tag = 'internal scratch']
  %s0 = inlined_call_operand.vmem [shape: f32[2,32], index: 0, kind: input, shape index: {}]
  %s1 = inlined_call_operand.vmem [shape: f32[32,128], index: 1, kind: input, shape index: {}]
  %s2 = inlined_call_operand.vmem [shape: f32[32,128], index: 2, kind: input, shape index: {}]
  %s3 = inlined_call_operand.vmem [shape: f32[1,128], index: 3, kind: input, shape index: {}]
  %s4 = inlined_call_operand.vmem [shape: f32[32,16], index: 4, kind: input, shape index: {}]
  %s5 = inlined_call_operand.vmem [shape: f32[1,16], index: 5, kind: input, shape index: {}]
  %s6 = inlined_call_operand.vmem [shape: f32[32,10], index: 6, kind: input, shape index: {}]
  %s7 = inlined_call_operand.vmem [shape: f32[1,10], index: 7, kind: input, shape index: {}]
  %s8 = inlined_call_operand.vmem [shape: f32[16,16], index: 8, kind: output, shape index: {0}]
  %s9 = inlined_call_operand.hbm [shape: f32[2,10], index: 9, kind: output, shape index: {1}]
  %10 = xla_tuple %s8, %s9
  %s11 = sld [smem:[#allocation0]]
  $region50: #{decoder_forward.1} parent=0
    _
  %s13 = ssub.s32 1, %s11
  %s14 = scalar_select 0, %s13, %s11
  $region1: #{decoder_forward.1} parent=0
    #allocation2 [shape = 'u8[1024]{0}', space=vmem, size = 0x400, scoped, tag = 'output window, operand 1, single buffered']
    #allocation3 [shape = 's32[1]{0}', space=sflag, size = 0x4, scoped, tag = 'scoped memory for decoder_forward.1']
    %15 = vsyncpa [#allocation3], 0
    // Predicated region
    $region2: #{decoder_forward.1} parent=1 // pred_check
      _
    $region3: #{decoder_forward.1} parent=1 // pred_check_branch
      %17 = sbr.rel (0) target = $region5
    $region4: #{decoder_forward.1} parent=1 // pred_region
      _
    $region5: #{decoder_forward.1} parent=1 // pred_fallthru
      _
    // Predicated region
    $region6: #{decoder_forward.1} parent=1 // pred_check
      _
    $region7: #{decoder_forward.1} parent=1 // pred_check_branch
      %19 = sbr.rel (0) target = $region9
    $region8: #{decoder_forward.1} parent=1 // pred_region
      _
    $region9: #{decoder_forward.1} parent=1 // pred_fallthru
      _
    // Predicated region
    $region10: #{decoder_forward.1} parent=1 // pred_check
      _
    $region11: #{decoder_forward.1} parent=1 // pred_check_branch
      %21 = sbr.rel (0) target = $region13
    $region12: #{decoder_forward.1} parent=1 // pred_region
      _
    $region13: #{decoder_forward.1} parent=1 // pred_fallthru
      _
    // Predicated region
    $region14: #{decoder_forward.1} parent=1 // pred_check
      _
    $region15: #{decoder_forward.1} parent=1 // pred_check_branch
      %23 = sbr.rel (0) target = $region17
    $region16: #{decoder_forward.1} parent=1 // pred_region
      _
    $region17: #{decoder_forward.1} parent=1 // pred_fallthru
      _
    // Predicated region
    $region18: #{decoder_forward.1} parent=1 // pred_check
      _
    $region19: #{decoder_forward.1} parent=1 // pred_check_branch
      %25 = sbr.rel (0) target = $region21
    $region20: #{decoder_forward.1} parent=1 // pred_region
      _
    $region21: #{decoder_forward.1} parent=1 // pred_fallthru
      _
    // Predicated region
    $region22: #{decoder_forward.1} parent=1 // pred_check
      _
    $region23: #{decoder_forward.1} parent=1 // pred_check_branch
      %27 = sbr.rel (0) target = $region25
    $region24: #{decoder_forward.1} parent=1 // pred_region
      _
    $region25: #{decoder_forward.1} parent=1 // pred_fallthru
      _
    // Predicated region
    $region26: #{decoder_forward.1} parent=1 // pred_check
      _
    $region27: #{decoder_forward.1} parent=1 // pred_check_branch
      %29 = sbr.rel (0) target = $region29
    $region28: #{decoder_forward.1} parent=1 // pred_region
      _
    $region29: #{decoder_forward.1} parent=1 // pred_fallthru
      _
    // Predicated region
    $region30: #{decoder_forward.1} parent=1 // pred_check
      _
    $region31: #{decoder_forward.1} parent=1 // pred_check_branch
      %31 = sbr.rel (0) target = $region33
    $region32: #{decoder_forward.1} parent=1 // pred_region
      _
    $region33: #{decoder_forward.1} parent=1 // pred_fallthru
      _
    %v32 = vld [vmem:[%s0] sm:$0x3]
    %v33 = vld [vmem:[%s2] sm:$0xff]
    %v34 = vld [vmem:[%s2 + $0x8] sm:$0xff]
    %v35 = vld [vmem:[%s2 + $0x10] sm:$0xff]
    %v36 = vld [vmem:[%s2 + $0x18] sm:$0xff]
    %v37 = vld [vmem:[%s1] sm:$0xff]
    %v38 = vld [vmem:[%s1 + $0x8] sm:$0xff]
    %v39 = vld [vmem:[%s1 + $0x10] sm:$0xff]
    %v40 = vld [vmem:[%s1 + $0x18] sm:$0xff]
    %v41 = vld [vmem:[%s3] sm:$0x1]
    %v43 = vlaneseq
    %v44 = vshrl.u32 %v43, 7
    %v45 = vsub.s32 0, %v44
    %v46 = vrot.slane %v41, %v45
    %vm48 = vcmask 261120
    %v50 = vsel %vm48, %v32, 0
    %52 = vmatprep.subr.mxu0 0.0
    %53 = vmatpush1.msra.mxu0 %v37
    %54 = vmatprep.subr.mxu0 0.0
    %55 = vmatpush1.msra.mxu0 %v38
    %56 = vmatprep.subr.mxu0 0.0
    %57 = vmatpush1.msra.mxu0 %v39
    %58 = vmatprep.subr.mxu0 0.0
    %59 = vmatpush1.msra.mxu0 %v40
    %60 = vmatprep.subr.mxu0 0.0
    %61 = vmatpush1.msra.mxu0 0.0
    %62 = vmatprep.subr.mxu0 0.0
    %63 = vmatpush1.msra.mxu0 0.0
    %64 = vmatprep.subr.mxu0 0.0
    %65 = vmatpush1.msra.mxu0 0.0
    %66 = vmatprep.subr.mxu0 0.0
    %67 = vmatpush1.msra.mxu0 0.0
    %68 = vmatprep.subr.mxu0 0.0
    %69 = vmatpush1.msra.mxu0 0.0
    %70 = vmatprep.subr.mxu0 0.0
    %71 = vmatpush1.msra.mxu0 0.0
    %72 = vmatprep.subr.mxu0 0.0
    %73 = vmatpush1.msra.mxu0 0.0
    %74 = vmatprep.subr.mxu0 0.0
    %75 = vmatpush1.msra.mxu0 0.0
    %76 = vmatprep.subr.mxu0 0.0
    %77 = vmatpush1.msra.mxu0 0.0
    %78 = vmatprep.subr.mxu0 0.0
    %79 = vmatpush1.msra.mxu0 0.0
    %80 = vmatprep.subr.mxu0 0.0
    %81 = vmatpush1.msra.mxu0 0.0
    %82 = vmatprep.subr.mxu0 0.0
    %83 = vmatpush1.msra.mxu0 0.0
    %84 = vmatprep.subr.mxu0 0.0
    %85 = vmatpush1.msra.mxu0 0.0
    %86 = vmatprep.subr.mxu0 0.0
    %87 = vmatpush1.msra.mxu0 0.0
    %88 = vmatprep.subr.mxu0 0.0
    %89 = vmatpush1.msra.mxu0 0.0
    %90 = vmatprep.subr.mxu0 0.0
    %91 = vmatpush1.msra.mxu0 0.0
    %92 = vmatprep.subr.mxu0 0.0
    %93 = vmatpush1.msra.mxu0 0.0
    %94 = vmatprep.subr.mxu0 0.0
    %95 = vmatpush1.msra.mxu0 0.0
    %96 = vmatprep.subr.mxu0 0.0
    %97 = vmatpush1.msra.mxu0 0.0
    %98 = vmatprep.subr.mxu0 0.0
    %99 = vmatpush1.msra.mxu0 0.0
    %100 = vmatprep.subr.mxu0 0.0
    %101 = vmatpush1.msra.mxu0 0.0
    %102 = vmatprep.subr.mxu0 0.0
    %103 = vmatpush1.msra.mxu0 0.0
    %104 = vmatprep.subr.mxu0 0.0
    %105 = vmatpush1.msra.mxu0 0.0
    %106 = vmatprep.subr.mxu0 0.0
    %107 = vmatpush1.msra.mxu0 0.0
    %108 = vmatprep.subr.mxu0 0.0
    %109 = vmatpush1.msra.mxu0 0.0
    %110 = vmatprep.subr.mxu0 0.0
    %111 = vmatpush1.msra.mxu0 0.0
    %112 = vmatprep.subr.mxu0 0.0
    %113 = vmatpush1.msra.mxu0 0.0
    %114 = vmatprep.subr.mxu0 0.0
    %115 = vmatpush1.msra.mxu0 0.0
    %116 = vmatprep.mubr.f32.mxu0 0.0
    %117 = vmatmul.mubr.f32.gmra.mrb[0].mxu0 %v50
    %v118 = vpop.f32.mrb[0].mxu0
    %v119 = vadd.f32 %v46, %v118
    %v120 = vpop.f32.mrb[0].mxu0
    %121 = vdwg.mxu0
    %v123 = vsel %vm48, 0.0, 0
    %125 = vmatprep.subr.mxu0 0.0
    %126 = vmatpush1.msra.mxu0 %v33
    %127 = vmatprep.subr.mxu0 0.0
    %128 = vmatpush1.msra.mxu0 %v34
    %129 = vmatprep.subr.mxu0 0.0
    %130 = vmatpush1.msra.mxu0 %v35
    %131 = vmatprep.subr.mxu0 0.0
    %132 = vmatpush1.msra.mxu0 %v36
    %133 = vmatprep.subr.mxu0 0.0
    %134 = vmatpush1.msra.mxu0 0.0
    %135 = vmatprep.subr.mxu0 0.0
    %136 = vmatpush1.msra.mxu0 0.0
    %137 = vmatprep.subr.mxu0 0.0
    %138 = vmatpush1.msra.mxu0 0.0
    %139 = vmatprep.subr.mxu0 0.0
    %140 = vmatpush1.msra.mxu0 0.0
    %141 = vmatprep.subr.mxu0 0.0
    %142 = vmatpush1.msra.mxu0 0.0
    %143 = vmatprep.subr.mxu0 0.0
    %144 = vmatpush1.msra.mxu0 0.0
    %145 = vmatprep.subr.mxu0 0.0
    %146 = vmatpush1.msra.mxu0 0.0
    %147 = vmatprep.subr.mxu0 0.0
    %148 = vmatpush1.msra.mxu0 0.0
    %149 = vmatprep.subr.mxu0 0.0
    %150 = vmatpush1.msra.mxu0 0.0
    %151 = vmatprep.subr.mxu0 0.0
    %152 = vmatpush1.msra.mxu0 0.0
    %153 = vmatprep.subr.mxu0 0.0
    %154 = vmatpush1.msra.mxu0 0.0
    %155 = vmatprep.subr.mxu0 0.0
    %156 = vmatpush1.msra.mxu0 0.0
    %157 = vmatprep.subr.mxu0 0.0
    %158 = vmatpush1.msra.mxu0 0.0
    %159 = vmatprep.subr.mxu0 0.0
    %160 = vmatpush1.msra.mxu0 0.0
    %161 = vmatprep.subr.mxu0 0.0
    %162 = vmatpush1.msra.mxu0 0.0
    %163 = vmatprep.subr.mxu0 0.0
    %164 = vmatpush1.msra.mxu0 0.0
    %165 = vmatprep.subr.mxu0 0.0
    %166 = vmatpush1.msra.mxu0 0.0
    %167 = vmatprep.subr.mxu0 0.0
    %168 = vmatpush1.msra.mxu0 0.0
    %169 = vmatprep.subr.mxu0 0.0
    %170 = vmatpush1.msra.mxu0 0.0
    %171 = vmatprep.subr.mxu0 0.0
    %172 = vmatpush1.msra.mxu0 0.0
    %173 = vmatprep.subr.mxu0 0.0
    %174 = vmatpush1.msra.mxu0 0.0
    %175 = vmatprep.subr.mxu0 0.0
    %176 = vmatpush1.msra.mxu0 0.0
    %177 = vmatprep.subr.mxu0 0.0
    %178 = vmatpush1.msra.mxu0 0.0
    %179 = vmatprep.subr.mxu0 0.0
    %180 = vmatpush1.msra.mxu0 0.0
    %181 = vmatprep.subr.mxu0 0.0
    %182 = vmatpush1.msra.mxu0 0.0
    %183 = vmatprep.subr.mxu0 0.0
    %184 = vmatpush1.msra.mxu0 0.0
    %185 = vmatprep.subr.mxu0 0.0
    %186 = vmatpush1.msra.mxu0 0.0
    %187 = vmatprep.subr.mxu0 0.0
    %188 = vmatpush1.msra.mxu0 0.0
    %189 = vmatprep.mubr.f32.mxu0 0.0
    %190 = vmatmul.mubr.f32.gmra.mrb[0].mxu0 %v123
    %v191 = vpop.f32.mrb[0].mxu0
    %v192 = vadd.f32 0.0, %v191
    %v193 = vpop.f32.mrb[0].mxu0
    %194 = vdwg.mxu0
    %v195 = vadd.f32 %v119, %v192
    %v196 = vxor.u32 %v195, 2147483648
    %v197 = vmul.f32 %v196, 1.442695
    %v198 = vpow.pop %v197
    %v199 = vadd.f32 %v198, 1.0
    %v200 = vrcp.pop %v199
    %v201 = vmul.f32 1.0, %v200
    %v202 = vtanh.pop %v195
    %v203 = vmul.f32 %v201, 0.0
    %205 = vrot.lane.b32.xlu0 %v202, 64
    %v206 = vpop.permute.xlu0 %205
    %v208 = vmul.f32 %v201, %v206
    %210 = vrot.lane.b32.xlu0 %v208, 32
    %v211 = vpop.permute.xlu0 %210
    %v213 = vadd.f32 %v203, %v211
    %v214 = vtanh.pop %v213
    %216 = vrot.lane.b32.xlu0 %v214, 64
    %v217 = vpop.permute.xlu0 %216
    %v219 = vmul.f32 %v201, %v217
    %221 = vrot.lane.b32.xlu0 %v219, 32
    %v222 = vpop.permute.xlu0 %221
    %v223 = vsel %vm48, %v222, 0
    %225 = vmatprep.subr.mxu0 0.0
    %226 = vmatpush1.msra.mxu0 %v33
    %227 = vmatprep.subr.mxu0 0.0
    %228 = vmatpush1.msra.mxu0 %v34
    %229 = vmatprep.subr.mxu0 0.0
    %230 = vmatpush1.msra.mxu0 %v35
    %231 = vmatprep.subr.mxu0 0.0
    %232 = vmatpush1.msra.mxu0 %v36
    %233 = vmatprep.subr.mxu0 0.0
    %234 = vmatpush1.msra.mxu0 0.0
    %235 = vmatprep.subr.mxu0 0.0
    %236 = vmatpush1.msra.mxu0 0.0
    %237 = vmatprep.subr.mxu0 0.0
    %238 = vmatpush1.msra.mxu0 0.0
    %239 = vmatprep.subr.mxu0 0.0
    %240 = vmatpush1.msra.mxu0 0.0
    %241 = vmatprep.subr.mxu0 0.0
    %242 = vmatpush1.msra.mxu0 0.0
    %243 = vmatprep.subr.mxu0 0.0
    %244 = vmatpush1.msra.mxu0 0.0
    %245 = vmatprep.subr.mxu0 0.0
    %246 = vmatpush1.msra.mxu0 0.0
    %247 = vmatprep.subr.mxu0 0.0
    %248 = vmatpush1.msra.mxu0 0.0
    %249 = vmatprep.subr.mxu0 0.0
    %250 = vmatpush1.msra.mxu0 0.0
    %251 = vmatprep.subr.mxu0 0.0
    %252 = vmatpush1.msra.mxu0 0.0
    %253 = vmatprep.subr.mxu0 0.0
    %254 = vmatpush1.msra.mxu0 0.0
    %255 = vmatprep.subr.mxu0 0.0
    %256 = vmatpush1.msra.mxu0 0.0
    %257 = vmatprep.subr.mxu0 0.0
    %258 = vmatpush1.msra.mxu0 0.0
    %259 = vmatprep.subr.mxu0 0.0
    %260 = vmatpush1.msra.mxu0 0.0
    %261 = vmatprep.subr.mxu0 0.0
    %262 = vmatpush1.msra.mxu0 0.0
    %263 = vmatprep.subr.mxu0 0.0
    %264 = vmatpush1.msra.mxu0 0.0
    %265 = vmatprep.subr.mxu0 0.0
    %266 = vmatpush1.msra.mxu0 0.0
    %267 = vmatprep.subr.mxu0 0.0
    %268 = vmatpush1.msra.mxu0 0.0
    %269 = vmatprep.subr.mxu0 0.0
    %270 = vmatpush1.msra.mxu0 0.0
    %271 = vmatprep.subr.mxu0 0.0
    %272 = vmatpush1.msra.mxu0 0.0
    %273 = vmatprep.subr.mxu0 0.0
    %274 = vmatpush1.msra.mxu0 0.0
    %275 = vmatprep.subr.mxu0 0.0
    %276 = vmatpush1.msra.mxu0 0.0
    %277 = vmatprep.subr.mxu0 0.0
    %278 = vmatpush1.msra.mxu0 0.0
    %279 = vmatprep.subr.mxu0 0.0
    %280 = vmatpush1.msra.mxu0 0.0
    %281 = vmatprep.subr.mxu0 0.0
    %282 = vmatpush1.msra.mxu0 0.0
    %283 = vmatprep.subr.mxu0 0.0
    %284 = vmatpush1.msra.mxu0 0.0
    %285 = vmatprep.subr.mxu0 0.0
    %286 = vmatpush1.msra.mxu0 0.0
    %287 = vmatprep.subr.mxu0 0.0
    %288 = vmatpush1.msra.mxu0 0.0
    %289 = vmatprep.mubr.f32.mxu0 0.0
    %290 = vmatmul.mubr.f32.gmra.mrb[0].mxu0 %v223
    %v291 = vpop.f32.mrb[0].mxu0
    %v292 = vadd.f32 0.0, %v291
    %v293 = vpop.f32.mrb[0].mxu0
    %294 = vdwg.mxu0
    %v295 = vadd.f32 %v119, %v292
    %v296 = vxor.u32 %v295, 2147483648
    %v297 = vmul.f32 %v296, 1.442695
    %v298 = vpow.pop %v297
    %v299 = vadd.f32 %v298, 1.0
    %v300 = vrcp.pop %v299
    %v301 = vmul.f32 1.0, %v300
    %v302 = vtanh.pop %v295
    %v303 = vmul.f32 %v301, %v213
    %305 = vrot.lane.b32.xlu0 %v302, 64
    %v306 = vpop.permute.xlu0 %305
    %v308 = vmul.f32 %v301, %v306
    %310 = vrot.lane.b32.xlu0 %v308, 32
    %v311 = vpop.permute.xlu0 %310
    %v313 = vadd.f32 %v303, %v311
    %v314 = vtanh.pop %v313
    %316 = vrot.lane.b32.xlu0 %v314, 64
    %v317 = vpop.permute.xlu0 %316
    %v319 = vmul.f32 %v301, %v317
    %321 = vrot.lane.b32.xlu0 %v319, 32
    %v322 = vpop.permute.xlu0 %321
    %v323 = vsel %vm48, %v322, 0
    %325 = vmatprep.subr.mxu0 0.0
    %326 = vmatpush1.msra.mxu0 %v33
    %327 = vmatprep.subr.mxu0 0.0
    %328 = vmatpush1.msra.mxu0 %v34
    %329 = vmatprep.subr.mxu0 0.0
    %330 = vmatpush1.msra.mxu0 %v35
    %331 = vmatprep.subr.mxu0 0.0
    %332 = vmatpush1.msra.mxu0 %v36
    %333 = vmatprep.subr.mxu0 0.0
    %334 = vmatpush1.msra.mxu0 0.0
    %335 = vmatprep.subr.mxu0 0.0
    %336 = vmatpush1.msra.mxu0 0.0
    %337 = vmatprep.subr.mxu0 0.0
    %338 = vmatpush1.msra.mxu0 0.0
    %339 = vmatprep.subr.mxu0 0.0
    %340 = vmatpush1.msra.mxu0 0.0
    %341 = vmatprep.subr.mxu0 0.0
    %342 = vmatpush1.msra.mxu0 0.0
    %343 = vmatprep.subr.mxu0 0.0
    %344 = vmatpush1.msra.mxu0 0.0
    %345 = vmatprep.subr.mxu0 0.0
    %346 = vmatpush1.msra.mxu0 0.0
    %347 = vmatprep.subr.mxu0 0.0
    %348 = vmatpush1.msra.mxu0 0.0
    %349 = vmatprep.subr.mxu0 0.0
    %350 = vmatpush1.msra.mxu0 0.0
    %351 = vmatprep.subr.mxu0 0.0
    %352 = vmatpush1.msra.mxu0 0.0
    %353 = vmatprep.subr.mxu0 0.0
    %354 = vmatpush1.msra.mxu0 0.0
    %355 = vmatprep.subr.mxu0 0.0
    %356 = vmatpush1.msra.mxu0 0.0
    %357 = vmatprep.subr.mxu0 0.0
    %358 = vmatpush1.msra.mxu0 0.0
    %359 = vmatprep.subr.mxu0 0.0
    %360 = vmatpush1.msra.mxu0 0.0
    %361 = vmatprep.subr.mxu0 0.0
    %362 = vmatpush1.msra.mxu0 0.0
    %363 = vmatprep.subr.mxu0 0.0
    %364 = vmatpush1.msra.mxu0 0.0
    %365 = vmatprep.subr.mxu0 0.0
    %366 = vmatpush1.msra.mxu0 0.0
    %367 = vmatprep.subr.mxu0 0.0
    %368 = vmatpush1.msra.mxu0 0.0
    %369 = vmatprep.subr.mxu0 0.0
    %370 = vmatpush1.msra.mxu0 0.0
    %371 = vmatprep.subr.mxu0 0.0
    %372 = vmatpush1.msra.mxu0 0.0
    %373 = vmatprep.subr.mxu0 0.0
    %374 = vmatpush1.msra.mxu0 0.0
    %375 = vmatprep.subr.mxu0 0.0
    %376 = vmatpush1.msra.mxu0 0.0
    %377 = vmatprep.subr.mxu0 0.0
    %378 = vmatpush1.msra.mxu0 0.0
    %379 = vmatprep.subr.mxu0 0.0
    %380 = vmatpush1.msra.mxu0 0.0
    %381 = vmatprep.subr.mxu0 0.0
    %382 = vmatpush1.msra.mxu0 0.0
    %383 = vmatprep.subr.mxu0 0.0
    %384 = vmatpush1.msra.mxu0 0.0
    %385 = vmatprep.subr.mxu0 0.0
    %386 = vmatpush1.msra.mxu0 0.0
    %387 = vmatprep.subr.mxu0 0.0
    %388 = vmatpush1.msra.mxu0 0.0
    %389 = vmatprep.mubr.f32.mxu0 0.0
    %390 = vmatmul.mubr.f32.gmra.mrb[0].mxu0 %v323
    %v391 = vpop.f32.mrb[0].mxu0
    %v392 = vadd.f32 0.0, %v391
    %v393 = vpop.f32.mrb[0].mxu0
    %394 = vdwg.mxu0
    %v395 = vadd.f32 %v119, %v392
    %v396 = vxor.u32 %v395, 2147483648
    %v397 = vmul.f32 %v396, 1.442695
    %v398 = vpow.pop %v397
    %v399 = vadd.f32 %v398, 1.0
    %v400 = vrcp.pop %v399
    %v401 = vmul.f32 1.0, %v400
    %v402 = vtanh.pop %v395
    %v403 = vmul.f32 %v401, %v313
    %405 = vrot.lane.b32.xlu0 %v402, 64
    %v406 = vpop.permute.xlu0 %405
    %v408 = vmul.f32 %v401, %v406
    %410 = vrot.lane.b32.xlu0 %v408, 32
    %v411 = vpop.permute.xlu0 %410
    %v413 = vadd.f32 %v403, %v411
    %v414 = vtanh.pop %v413
    %416 = vrot.lane.b32.xlu0 %v414, 64
    %v417 = vpop.permute.xlu0 %416
    %v419 = vmul.f32 %v401, %v417
    %421 = vrot.lane.b32.xlu0 %v419, 32
    %v422 = vpop.permute.xlu0 %421
    %v423 = vsel %vm48, %v422, 0
    %425 = vmatprep.subr.mxu0 0.0
    %426 = vmatpush1.msra.mxu0 %v33
    %427 = vmatprep.subr.mxu0 0.0
    %428 = vmatpush1.msra.mxu0 %v34
    %429 = vmatprep.subr.mxu0 0.0
    %430 = vmatpush1.msra.mxu0 %v35
    %431 = vmatprep.subr.mxu0 0.0
    %432 = vmatpush1.msra.mxu0 %v36
    %433 = vmatprep.subr.mxu0 0.0
    %434 = vmatpush1.msra.mxu0 0.0
    %435 = vmatprep.subr.mxu0 0.0
    %436 = vmatpush1.msra.mxu0 0.0
    %437 = vmatprep.subr.mxu0 0.0
    %438 = vmatpush1.msra.mxu0 0.0
    %439 = vmatprep.subr.mxu0 0.0
    %440 = vmatpush1.msra.mxu0 0.0
    %441 = vmatprep.subr.mxu0 0.0
    %442 = vmatpush1.msra.mxu0 0.0
    %443 = vmatprep.subr.mxu0 0.0
    %444 = vmatpush1.msra.mxu0 0.0
    %445 = vmatprep.subr.mxu0 0.0
    %446 = vmatpush1.msra.mxu0 0.0
    %447 = vmatprep.subr.mxu0 0.0
    %448 = vmatpush1.msra.mxu0 0.0
    %449 = vmatprep.subr.mxu0 0.0
    %450 = vmatpush1.msra.mxu0 0.0
    %451 = vmatprep.subr.mxu0 0.0
    %452 = vmatpush1.msra.mxu0 0.0
    %453 = vmatprep.subr.mxu0 0.0
    %454 = vmatpush1.msra.mxu0 0.0
    %455 = vmatprep.subr.mxu0 0.0
    %456 = vmatpush1.msra.mxu0 0.0
    %457 = vmatprep.subr.mxu0 0.0
    %458 = vmatpush1.msra.mxu0 0.0
    %459 = vmatprep.subr.mxu0 0.0
    %460 = vmatpush1.msra.mxu0 0.0
    %461 = vmatprep.subr.mxu0 0.0
    %462 = vmatpush1.msra.mxu0 0.0
    %463 = vmatprep.subr.mxu0 0.0
    %464 = vmatpush1.msra.mxu0 0.0
    %465 = vmatprep.subr.mxu0 0.0
    %466 = vmatpush1.msra.mxu0 0.0
    %467 = vmatprep.subr.mxu0 0.0
    %468 = vmatpush1.msra.mxu0 0.0
    %469 = vmatprep.subr.mxu0 0.0
    %470 = vmatpush1.msra.mxu0 0.0
    %471 = vmatprep.subr.mxu0 0.0
    %472 = vmatpush1.msra.mxu0 0.0
    %473 = vmatprep.subr.mxu0 0.0
    %474 = vmatpush1.msra.mxu0 0.0
    %475 = vmatprep.subr.mxu0 0.0
    %476 = vmatpush1.msra.mxu0 0.0
    %477 = vmatprep.subr.mxu0 0.0
    %478 = vmatpush1.msra.mxu0 0.0
    %479 = vmatprep.subr.mxu0 0.0
    %480 = vmatpush1.msra.mxu0 0.0
    %481 = vmatprep.subr.mxu0 0.0
    %482 = vmatpush1.msra.mxu0 0.0
    %483 = vmatprep.subr.mxu0 0.0
    %484 = vmatpush1.msra.mxu0 0.0
    %485 = vmatprep.subr.mxu0 0.0
    %486 = vmatpush1.msra.mxu0 0.0
    %487 = vmatprep.subr.mxu0 0.0
    %488 = vmatpush1.msra.mxu0 0.0
    %489 = vmatprep.mubr.f32.mxu0 0.0
    %490 = vmatmul.mubr.f32.gmra.mrb[0].mxu0 %v423
    %v491 = vpop.f32.mrb[0].mxu0
    %v492 = vadd.f32 0.0, %v491
    %v493 = vpop.f32.mrb[0].mxu0
    %494 = vdwg.mxu0
    %v495 = vadd.f32 %v119, %v492
    %v496 = vxor.u32 %v495, 2147483648
    %v497 = vmul.f32 %v496, 1.442695
    %v498 = vpow.pop %v497
    %v499 = vadd.f32 %v498, 1.0
    %v500 = vrcp.pop %v499
    %v501 = vmul.f32 1.0, %v500
    %v502 = vtanh.pop %v495
    %v503 = vmul.f32 %v501, %v413
    %505 = vrot.lane.b32.xlu0 %v502, 64
    %v506 = vpop.permute.xlu0 %505
    %v508 = vmul.f32 %v501, %v506
    %510 = vrot.lane.b32.xlu0 %v508, 32
    %v511 = vpop.permute.xlu0 %510
    %v513 = vadd.f32 %v503, %v511
    %v514 = vtanh.pop %v513
    %516 = vrot.lane.b32.xlu0 %v514, 64
    %v517 = vpop.permute.xlu0 %516
    %v519 = vmul.f32 %v501, %v517
    %521 = vrot.lane.b32.xlu0 %v519, 32
    %v522 = vpop.permute.xlu0 %521
    %v523 = vsel %vm48, %v522, 0
    %525 = vmatprep.subr.mxu0 0.0
    %526 = vmatpush1.msra.mxu0 %v33
    %527 = vmatprep.subr.mxu0 0.0
    %528 = vmatpush1.msra.mxu0 %v34
    %529 = vmatprep.subr.mxu0 0.0
    %530 = vmatpush1.msra.mxu0 %v35
    %531 = vmatprep.subr.mxu0 0.0
    %532 = vmatpush1.msra.mxu0 %v36
    %533 = vmatprep.subr.mxu0 0.0
    %534 = vmatpush1.msra.mxu0 0.0
    %535 = vmatprep.subr.mxu0 0.0
    %536 = vmatpush1.msra.mxu0 0.0
    %537 = vmatprep.subr.mxu0 0.0
    %538 = vmatpush1.msra.mxu0 0.0
    %539 = vmatprep.subr.mxu0 0.0
    %540 = vmatpush1.msra.mxu0 0.0
    %541 = vmatprep.subr.mxu0 0.0
    %542 = vmatpush1.msra.mxu0 0.0
    %543 = vmatprep.subr.mxu0 0.0
    %544 = vmatpush1.msra.mxu0 0.0
    %545 = vmatprep.subr.mxu0 0.0
    %546 = vmatpush1.msra.mxu0 0.0
    %547 = vmatprep.subr.mxu0 0.0
    %548 = vmatpush1.msra.mxu0 0.0
    %549 = vmatprep.subr.mxu0 0.0
    %550 = vmatpush1.msra.mxu0 0.0
    %551 = vmatprep.subr.mxu0 0.0
    %552 = vmatpush1.msra.mxu0 0.0
    %553 = vmatprep.subr.mxu0 0.0
    %554 = vmatpush1.msra.mxu0 0.0
    %555 = vmatprep.subr.mxu0 0.0
    %556 = vmatpush1.msra.mxu0 0.0
    %557 = vmatprep.subr.mxu0 0.0
    %558 = vmatpush1.msra.mxu0 0.0
    %559 = vmatprep.subr.mxu0 0.0
    %560 = vmatpush1.msra.mxu0 0.0
    %561 = vmatprep.subr.mxu0 0.0
    %562 = vmatpush1.msra.mxu0 0.0
    %563 = vmatprep.subr.mxu0 0.0
    %564 = vmatpush1.msra.mxu0 0.0
    %565 = vmatprep.subr.mxu0 0.0
    %566 = vmatpush1.msra.mxu0 0.0
    %567 = vmatprep.subr.mxu0 0.0
    %568 = vmatpush1.msra.mxu0 0.0
    %569 = vmatprep.subr.mxu0 0.0
    %570 = vmatpush1.msra.mxu0 0.0
    %571 = vmatprep.subr.mxu0 0.0
    %572 = vmatpush1.msra.mxu0 0.0
    %573 = vmatprep.subr.mxu0 0.0
    %574 = vmatpush1.msra.mxu0 0.0
    %575 = vmatprep.subr.mxu0 0.0
    %576 = vmatpush1.msra.mxu0 0.0
    %577 = vmatprep.subr.mxu0 0.0
    %578 = vmatpush1.msra.mxu0 0.0
    %579 = vmatprep.subr.mxu0 0.0
    %580 = vmatpush1.msra.mxu0 0.0
    %581 = vmatprep.subr.mxu0 0.0
    %582 = vmatpush1.msra.mxu0 0.0
    %583 = vmatprep.subr.mxu0 0.0
    %584 = vmatpush1.msra.mxu0 0.0
    %585 = vmatprep.subr.mxu0 0.0
    %586 = vmatpush1.msra.mxu0 0.0
    %587 = vmatprep.subr.mxu0 0.0
    %588 = vmatpush1.msra.mxu0 0.0
    %589 = vmatprep.mubr.f32.mxu0 0.0
    %590 = vmatmul.mubr.f32.gmra.mrb[0].mxu0 %v523
    %v591 = vpop.f32.mrb[0].mxu0
    %v592 = vadd.f32 0.0, %v591
    %v593 = vpop.f32.mrb[0].mxu0
    %594 = vdwg.mxu0
    %v595 = vadd.f32 %v119, %v592
    %v596 = vxor.u32 %v595, 2147483648
    %v597 = vmul.f32 %v596, 1.442695
    %v598 = vpow.pop %v597
    %v599 = vadd.f32 %v598, 1.0
    %v600 = vrcp.pop %v599
    %v601 = vmul.f32 1.0, %v600
    %v602 = vtanh.pop %v595
    %v603 = vmul.f32 %v601, %v513
    %605 = vrot.lane.b32.xlu0 %v602, 64
    %v606 = vpop.permute.xlu0 %605
    %v608 = vmul.f32 %v601, %v606
    %610 = vrot.lane.b32.xlu0 %v608, 32
    %v611 = vpop.permute.xlu0 %610
    %v613 = vadd.f32 %v603, %v611
    %v614 = vtanh.pop %v613
    %616 = vrot.lane.b32.xlu0 %v614, 64
    %v617 = vpop.permute.xlu0 %616
    %v619 = vmul.f32 %v601, %v617
    %621 = vrot.lane.b32.xlu0 %v619, 32
    %v622 = vpop.permute.xlu0 %621
    %v623 = vsel %vm48, %v622, 0
    %625 = vmatprep.subr.mxu0 0.0
    %626 = vmatpush1.msra.mxu0 %v33
    %627 = vmatprep.subr.mxu0 0.0
    %628 = vmatpush1.msra.mxu0 %v34
    %629 = vmatprep.subr.mxu0 0.0
    %630 = vmatpush1.msra.mxu0 %v35
    %631 = vmatprep.subr.mxu0 0.0
    %632 = vmatpush1.msra.mxu0 %v36
    %633 = vmatprep.subr.mxu0 0.0
    %634 = vmatpush1.msra.mxu0 0.0
    %635 = vmatprep.subr.mxu0 0.0
    %636 = vmatpush1.msra.mxu0 0.0
    %637 = vmatprep.subr.mxu0 0.0
    %638 = vmatpush1.msra.mxu0 0.0
    %639 = vmatprep.subr.mxu0 0.0
    %640 = vmatpush1.msra.mxu0 0.0
    %641 = vmatprep.subr.mxu0 0.0
    %642 = vmatpush1.msra.mxu0 0.0
    %643 = vmatprep.subr.mxu0 0.0
    %644 = vmatpush1.msra.mxu0 0.0
    %645 = vmatprep.subr.mxu0 0.0
    %646 = vmatpush1.msra.mxu0 0.0
    %647 = vmatprep.subr.mxu0 0.0
    %648 = vmatpush1.msra.mxu0 0.0
    %649 = vmatprep.subr.mxu0 0.0
    %650 = vmatpush1.msra.mxu0 0.0
    %651 = vmatprep.subr.mxu0 0.0
    %652 = vmatpush1.msra.mxu0 0.0
    %653 = vmatprep.subr.mxu0 0.0
    %654 = vmatpush1.msra.mxu0 0.0
    %655 = vmatprep.subr.mxu0 0.0
    %656 = vmatpush1.msra.mxu0 0.0
    %657 = vmatprep.subr.mxu0 0.0
    %658 = vmatpush1.msra.mxu0 0.0
    %659 = vmatprep.subr.mxu0 0.0
    %660 = vmatpush1.msra.mxu0 0.0
    %661 = vmatprep.subr.mxu0 0.0
    %662 = vmatpush1.msra.mxu0 0.0
    %663 = vmatprep.subr.mxu0 0.0
    %664 = vmatpush1.msra.mxu0 0.0
    %665 = vmatprep.subr.mxu0 0.0
    %666 = vmatpush1.msra.mxu0 0.0
    %667 = vmatprep.subr.mxu0 0.0
    %668 = vmatpush1.msra.mxu0 0.0
    %669 = vmatprep.subr.mxu0 0.0
    %670 = vmatpush1.msra.mxu0 0.0
    %671 = vmatprep.subr.mxu0 0.0
    %672 = vmatpush1.msra.mxu0 0.0
    %673 = vmatprep.subr.mxu0 0.0
    %674 = vmatpush1.msra.mxu0 0.0
    %675 = vmatprep.subr.mxu0 0.0
    %676 = vmatpush1.msra.mxu0 0.0
    %677 = vmatprep.subr.mxu0 0.0
    %678 = vmatpush1.msra.mxu0 0.0
    %679 = vmatprep.subr.mxu0 0.0
    %680 = vmatpush1.msra.mxu0 0.0
    %681 = vmatprep.subr.mxu0 0.0
    %682 = vmatpush1.msra.mxu0 0.0
    %683 = vmatprep.subr.mxu0 0.0
    %684 = vmatpush1.msra.mxu0 0.0
    %685 = vmatprep.subr.mxu0 0.0
    %686 = vmatpush1.msra.mxu0 0.0
    %687 = vmatprep.subr.mxu0 0.0
    %688 = vmatpush1.msra.mxu0 0.0
    %689 = vmatprep.mubr.f32.mxu0 0.0
    %690 = vmatmul.mubr.f32.gmra.mrb[0].mxu0 %v623
    %v691 = vpop.f32.mrb[0].mxu0
    %v692 = vadd.f32 0.0, %v691
    %v693 = vpop.f32.mrb[0].mxu0
    %694 = vdwg.mxu0
    %v695 = vadd.f32 %v119, %v692
    %v696 = vxor.u32 %v695, 2147483648
    %v697 = vmul.f32 %v696, 1.442695
    %v698 = vpow.pop %v697
    %v699 = vadd.f32 %v698, 1.0
    %v700 = vrcp.pop %v699
    %v701 = vmul.f32 1.0, %v700
    %v702 = vtanh.pop %v695
    %v703 = vmul.f32 %v701, %v613
    %705 = vrot.lane.b32.xlu0 %v702, 64
    %v706 = vpop.permute.xlu0 %705
    %v708 = vmul.f32 %v701, %v706
    %710 = vrot.lane.b32.xlu0 %v708, 32
    %v711 = vpop.permute.xlu0 %710
    %v713 = vadd.f32 %v703, %v711
    %v714 = vtanh.pop %v713
    %716 = vrot.lane.b32.xlu0 %v714, 64
    %v717 = vpop.permute.xlu0 %716
    %v719 = vmul.f32 %v701, %v717
    %721 = vrot.lane.b32.xlu0 %v719, 32
    %v722 = vpop.permute.xlu0 %721
    %v723 = vsel %vm48, %v722, 0
    %725 = vmatprep.subr.mxu0 0.0
    %726 = vmatpush1.msra.mxu0 %v33
    %727 = vmatprep.subr.mxu0 0.0
    %728 = vmatpush1.msra.mxu0 %v34
    %729 = vmatprep.subr.mxu0 0.0
    %730 = vmatpush1.msra.mxu0 %v35
    %731 = vmatprep.subr.mxu0 0.0
    %732 = vmatpush1.msra.mxu0 %v36
    %733 = vmatprep.subr.mxu0 0.0
    %734 = vmatpush1.msra.mxu0 0.0
    %735 = vmatprep.subr.mxu0 0.0
    %736 = vmatpush1.msra.mxu0 0.0
    %737 = vmatprep.subr.mxu0 0.0
    %738 = vmatpush1.msra.mxu0 0.0
    %739 = vmatprep.subr.mxu0 0.0
    %740 = vmatpush1.msra.mxu0 0.0
    %741 = vmatprep.subr.mxu0 0.0
    %742 = vmatpush1.msra.mxu0 0.0
    %743 = vmatprep.subr.mxu0 0.0
    %744 = vmatpush1.msra.mxu0 0.0
    %745 = vmatprep.subr.mxu0 0.0
    %746 = vmatpush1.msra.mxu0 0.0
    %747 = vmatprep.subr.mxu0 0.0
    %748 = vmatpush1.msra.mxu0 0.0
    %749 = vmatprep.subr.mxu0 0.0
    %750 = vmatpush1.msra.mxu0 0.0
    %751 = vmatprep.subr.mxu0 0.0
    %752 = vmatpush1.msra.mxu0 0.0
    %753 = vmatprep.subr.mxu0 0.0
    %754 = vmatpush1.msra.mxu0 0.0
    %755 = vmatprep.subr.mxu0 0.0
    %756 = vmatpush1.msra.mxu0 0.0
    %757 = vmatprep.subr.mxu0 0.0
    %758 = vmatpush1.msra.mxu0 0.0
    %759 = vmatprep.subr.mxu0 0.0
    %760 = vmatpush1.msra.mxu0 0.0
    %761 = vmatprep.subr.mxu0 0.0
    %762 = vmatpush1.msra.mxu0 0.0
    %763 = vmatprep.subr.mxu0 0.0
    %764 = vmatpush1.msra.mxu0 0.0
    %765 = vmatprep.subr.mxu0 0.0
    %766 = vmatpush1.msra.mxu0 0.0
    %767 = vmatprep.subr.mxu0 0.0
    %768 = vmatpush1.msra.mxu0 0.0
    %769 = vmatprep.subr.mxu0 0.0
    %770 = vmatpush1.msra.mxu0 0.0
    %771 = vmatprep.subr.mxu0 0.0
    %772 = vmatpush1.msra.mxu0 0.0
    %773 = vmatprep.subr.mxu0 0.0
    %774 = vmatpush1.msra.mxu0 0.0
    %775 = vmatprep.subr.mxu0 0.0
    %776 = vmatpush1.msra.mxu0 0.0
    %777 = vmatprep.subr.mxu0 0.0
    %778 = vmatpush1.msra.mxu0 0.0
    %779 = vmatprep.subr.mxu0 0.0
    %780 = vmatpush1.msra.mxu0 0.0
    %781 = vmatprep.subr.mxu0 0.0
    %782 = vmatpush1.msra.mxu0 0.0
    %783 = vmatprep.subr.mxu0 0.0
    %784 = vmatpush1.msra.mxu0 0.0
    %785 = vmatprep.subr.mxu0 0.0
    %786 = vmatpush1.msra.mxu0 0.0
    %787 = vmatprep.subr.mxu0 0.0
    %788 = vmatpush1.msra.mxu0 0.0
    %789 = vmatprep.mubr.f32.mxu0 0.0
    %790 = vmatmul.mubr.f32.gmra.mrb[0].mxu0 %v723
    %v791 = vpop.f32.mrb[0].mxu0
    %v792 = vadd.f32 0.0, %v791
    %v793 = vpop.f32.mrb[0].mxu0
    %794 = vdwg.mxu0
    %v795 = vadd.f32 %v119, %v792
    %v796 = vxor.u32 %v795, 2147483648
    %v797 = vmul.f32 %v796, 1.442695
    %v798 = vpow.pop %v797
    %v799 = vadd.f32 %v798, 1.0
    %v800 = vrcp.pop %v799
    %v801 = vmul.f32 1.0, %v800
    %v802 = vtanh.pop %v795
    %v803 = vmul.f32 %v801, %v713
    %805 = vrot.lane.b32.xlu0 %v802, 64
    %v806 = vpop.permute.xlu0 %805
    %v808 = vmul.f32 %v801, %v806
    %810 = vrot.lane.b32.xlu0 %v808, 32
    %v811 = vpop.permute.xlu0 %810
    %v813 = vadd.f32 %v803, %v811
    %v814 = vtanh.pop %v813
    %816 = vrot.lane.b32.xlu0 %v814, 64
    %v817 = vpop.permute.xlu0 %816
    %v819 = vmul.f32 %v801, %v817
    %821 = vrot.lane.b32.xlu0 %v819, 32
    %v822 = vpop.permute.xlu0 %821
    %v823 = vsel %vm48, %v822, 0
    %825 = vmatprep.subr.mxu0 0.0
    %826 = vmatpush1.msra.mxu0 %v33
    %827 = vmatprep.subr.mxu0 0.0
    %828 = vmatpush1.msra.mxu0 %v34
    %829 = vmatprep.subr.mxu0 0.0
    %830 = vmatpush1.msra.mxu0 %v35
    %831 = vmatprep.subr.mxu0 0.0
    %832 = vmatpush1.msra.mxu0 %v36
    %833 = vmatprep.subr.mxu0 0.0
    %834 = vmatpush1.msra.mxu0 0.0
    %835 = vmatprep.subr.mxu0 0.0
    %836 = vmatpush1.msra.mxu0 0.0
    %837 = vmatprep.subr.mxu0 0.0
    %838 = vmatpush1.msra.mxu0 0.0
    %839 = vmatprep.subr.mxu0 0.0
    %840 = vmatpush1.msra.mxu0 0.0
    %841 = vmatprep.subr.mxu0 0.0
    %842 = vmatpush1.msra.mxu0 0.0
    %843 = vmatprep.subr.mxu0 0.0
    %844 = vmatpush1.msra.mxu0 0.0
    %845 = vmatprep.subr.mxu0 0.0
    %846 = vmatpush1.msra.mxu0 0.0
    %847 = vmatprep.subr.mxu0 0.0
    %848 = vmatpush1.msra.mxu0 0.0
    %849 = vmatprep.subr.mxu0 0.0
    %850 = vmatpush1.msra.mxu0 0.0
    %851 = vmatprep.subr.mxu0 0.0
    %852 = vmatpush1.msra.mxu0 0.0
    %853 = vmatprep.subr.mxu0 0.0
    %854 = vmatpush1.msra.mxu0 0.0
    %855 = vmatprep.subr.mxu0 0.0
    %856 = vmatpush1.msra.mxu0 0.0
    %857 = vmatprep.subr.mxu0 0.0
    %858 = vmatpush1.msra.mxu0 0.0
    %859 = vmatprep.subr.mxu0 0.0
    %860 = vmatpush1.msra.mxu0 0.0
    %861 = vmatprep.subr.mxu0 0.0
    %862 = vmatpush1.msra.mxu0 0.0
    %863 = vmatprep.subr.mxu0 0.0
    %864 = vmatpush1.msra.mxu0 0.0
    %865 = vmatprep.subr.mxu0 0.0
    %866 = vmatpush1.msra.mxu0 0.0
    %867 = vmatprep.subr.mxu0 0.0
    %868 = vmatpush1.msra.mxu0 0.0
    %869 = vmatprep.subr.mxu0 0.0
    %870 = vmatpush1.msra.mxu0 0.0
    %871 = vmatprep.subr.mxu0 0.0
    %872 = vmatpush1.msra.mxu0 0.0
    %873 = vmatprep.subr.mxu0 0.0
    %874 = vmatpush1.msra.mxu0 0.0
    %875 = vmatprep.subr.mxu0 0.0
    %876 = vmatpush1.msra.mxu0 0.0
    %877 = vmatprep.subr.mxu0 0.0
    %878 = vmatpush1.msra.mxu0 0.0
    %879 = vmatprep.subr.mxu0 0.0
    %880 = vmatpush1.msra.mxu0 0.0
    %881 = vmatprep.subr.mxu0 0.0
    %882 = vmatpush1.msra.mxu0 0.0
    %883 = vmatprep.subr.mxu0 0.0
    %884 = vmatpush1.msra.mxu0 0.0
    %885 = vmatprep.subr.mxu0 0.0
    %886 = vmatpush1.msra.mxu0 0.0
    %887 = vmatprep.subr.mxu0 0.0
    %888 = vmatpush1.msra.mxu0 0.0
    %889 = vmatprep.mubr.f32.mxu0 0.0
    %890 = vmatmul.mubr.f32.gmra.mrb[0].mxu0 %v823
    %v891 = vpop.f32.mrb[0].mxu0
    %v892 = vadd.f32 0.0, %v891
    %v893 = vpop.f32.mrb[0].mxu0
    %894 = vdwg.mxu0
    %v895 = vadd.f32 %v119, %v892
    %v896 = vxor.u32 %v895, 2147483648
    %v897 = vmul.f32 %v896, 1.442695
    %v898 = vpow.pop %v897
    %v899 = vadd.f32 %v898, 1.0
    %v900 = vrcp.pop %v899
    %v901 = vmul.f32 1.0, %v900
    %v902 = vtanh.pop %v895
    %v903 = vmul.f32 %v901, %v813
    %905 = vrot.lane.b32.xlu0 %v902, 64
    %v906 = vpop.permute.xlu0 %905
    %v908 = vmul.f32 %v901, %v906
    %910 = vrot.lane.b32.xlu0 %v908, 32
    %v911 = vpop.permute.xlu0 %910
    %v913 = vadd.f32 %v903, %v911
    %v914 = vtanh.pop %v913
    %916 = vrot.lane.b32.xlu0 %v914, 64
    %v917 = vpop.permute.xlu0 %916
    %v919 = vmul.f32 %v901, %v917
    %v920 = vrot.slane %v319, 6
    %v922 = vrot.slane %v419, 4
    %v924 = vrot.slane %v519, 2
    %v926 = vrot.slane %v719, 6
    %v928 = vrot.slane %v819, 4
    %v931 = vrot.slane %v919, 2
    %vm933 = vcmask 1041408
    %v934 = vsel %vm933, %v219, %v920
    %vm935 = vcmask 1043456
    %v936 = vsel %vm935, %v934, %v922
    %vm937 = vcmask 1045504
    %v938 = vsel %vm937, %v936, %v924
    %v939 = vsel %vm933, %v619, %v926
    %v940 = vsel %vm935, %v939, %v928
    %v941 = vsel %vm937, %v940, %v931
    %v942 = vld [vmem:[%s4] sm:$0xff]
    %v943 = vld [vmem:[%s4 + $0x8] sm:$0xff]
    %v944 = vld [vmem:[%s4 + $0x10] sm:$0xff]
    %v945 = vld [vmem:[%s4 + $0x18] sm:$0xff]
    %v946 = vld [vmem:[%s5] sm:$0x1]
    %v948 = vlaneseq
    %v949 = vshrl.u32 %v948, 7
    %v950 = vsub.s32 0, %v949
    %v951 = vrot.slane %v946, %v950
    %955 = vrot.lane.b32.xlu0 %v938, 32
    %v956 = vpop.permute.xlu0 %955
    %957 = vrot.lane.b32.xlu0 %v941, 32
    %v958 = vpop.permute.xlu0 %957
    %v959 = vsel %vm48, %v956, 0
    %v961 = vsel %vm48, %v958, 0
    %963 = vmatprep.subr.mxu0 0.0
    %964 = vmatpush1.msra.mxu0 %v942
    %965 = vmatprep.subr.mxu0 0.0
    %966 = vmatpush1.msra.mxu0 %v943
    %967 = vmatprep.subr.mxu0 0.0
    %968 = vmatpush1.msra.mxu0 %v944
    %969 = vmatprep.subr.mxu0 0.0
    %970 = vmatpush1.msra.mxu0 %v945
    %971 = vmatprep.subr.mxu0 0.0
    %972 = vmatpush1.msra.mxu0 0.0
    %973 = vmatprep.subr.mxu0 0.0
    %974 = vmatpush1.msra.mxu0 0.0
    %975 = vmatprep.subr.mxu0 0.0
    %976 = vmatpush1.msra.mxu0 0.0
    %977 = vmatprep.subr.mxu0 0.0
    %978 = vmatpush1.msra.mxu0 0.0
    %979 = vmatprep.subr.mxu0 0.0
    %980 = vmatpush1.msra.mxu0 0.0
    %981 = vmatprep.subr.mxu0 0.0
    %982 = vmatpush1.msra.mxu0 0.0
    %983 = vmatprep.subr.mxu0 0.0
    %984 = vmatpush1.msra.mxu0 0.0
    %985 = vmatprep.subr.mxu0 0.0
    %986 = vmatpush1.msra.mxu0 0.0
    %987 = vmatprep.subr.mxu0 0.0
    %988 = vmatpush1.msra.mxu0 0.0
    %989 = vmatprep.subr.mxu0 0.0
    %990 = vmatpush1.msra.mxu0 0.0
    %991 = vmatprep.subr.mxu0 0.0
    %992 = vmatpush1.msra.mxu0 0.0
    %993 = vmatprep.subr.mxu0 0.0
    %994 = vmatpush1.msra.mxu0 0.0
    %995 = vmatprep.subr.mxu0 0.0
    %996 = vmatpush1.msra.mxu0 0.0
    %997 = vmatprep.subr.mxu0 0.0
    %998 = vmatpush1.msra.mxu0 0.0
    %999 = vmatprep.subr.mxu0 0.0
    %1000 = vmatpush1.msra.mxu0 0.0
    %1001 = vmatprep.subr.mxu0 0.0
    %1002 = vmatpush1.msra.mxu0 0.0
    %1003 = vmatprep.subr.mxu0 0.0
    %1004 = vmatpush1.msra.mxu0 0.0
    %1005 = vmatprep.subr.mxu0 0.0
    %1006 = vmatpush1.msra.mxu0 0.0
    %1007 = vmatprep.subr.mxu0 0.0
    %1008 = vmatpush1.msra.mxu0 0.0
    %1009 = vmatprep.subr.mxu0 0.0
    %1010 = vmatpush1.msra.mxu0 0.0
    %1011 = vmatprep.subr.mxu0 0.0
    %1012 = vmatpush1.msra.mxu0 0.0
    %1013 = vmatprep.subr.mxu0 0.0
    %1014 = vmatpush1.msra.mxu0 0.0
    %1015 = vmatprep.subr.mxu0 0.0
    %1016 = vmatpush1.msra.mxu0 0.0
    %1017 = vmatprep.subr.mxu0 0.0
    %1018 = vmatpush1.msra.mxu0 0.0
    %1019 = vmatprep.subr.mxu0 0.0
    %1020 = vmatpush1.msra.mxu0 0.0
    %1021 = vmatprep.subr.mxu0 0.0
    %1022 = vmatpush1.msra.mxu0 0.0
    %1023 = vmatprep.subr.mxu0 0.0
    %1024 = vmatpush1.msra.mxu0 0.0
    %1025 = vmatprep.subr.mxu0 0.0
    %1026 = vmatpush1.msra.mxu0 0.0
    %1027 = vmatprep.mubr.f32.mxu0 0.0
    %1028 = vmatmul.mubr.f32.gmra.mrb[0].mxu0 %v959
    %v1029 = vpop.f32.mrb[0].mxu0
    %v1030 = vadd.f32 %v951, %v1029
    %v1031 = vpop.f32.mrb[0].mxu0
    %1032 = vmatprep.mubr.f32.mxu0 0.0
    %1033 = vmatmul.mubr.f32.gmra.mrb[0].mxu0 %v961
    %v1034 = vpop.f32.mrb[0].mxu0
    %v1035 = vadd.f32 %v951, %v1034
    %v1036 = vpop.f32.mrb[0].mxu0
    %1037 = vdwg.mxu0
    %vm1038 = vcmask 130048
    %1039 = vst.msk [vmem:[%s8] sm:$0xff] %vm1038, %v1030
    %1040 = vst.msk [vmem:[%s8 + $0x8] sm:$0xff] %vm1038, %v1035
    %v1041 = vld [vmem:[%s6] sm:$0xff]
    %v1042 = vld [vmem:[%s6 + $0x8] sm:$0xff]
    %v1043 = vld [vmem:[%s6 + $0x10] sm:$0xff]
    %v1044 = vld [vmem:[%s6 + $0x18] sm:$0xff]
    %v1045 = vld [vmem:[%s7] sm:$0x1]
    %v1047 = vlaneseq
    %v1048 = vshrl.u32 %v1047, 7
    %v1049 = vsub.s32 0, %v1048
    %v1050 = vrot.slane %v1045, %v1049
    %1052 = vrot.lane.b32.xlu0 %v919, 32
    %v1053 = vpop.permute.xlu0 %1052
    %v1054 = vsel %vm48, %v1053, 0
    %1056 = vmatprep.subr.mxu0 0.0
    %1057 = vmatpush1.msra.mxu0 %v1041
    %1058 = vmatprep.subr.mxu0 0.0
    %1059 = vmatpush1.msra.mxu0 %v1042
    %1060 = vmatprep.subr.mxu0 0.0
    %1061 = vmatpush1.msra.mxu0 %v1043
    %1062 = vmatprep.subr.mxu0 0.0
    %1063 = vmatpush1.msra.mxu0 %v1044
    %1064 = vmatprep.subr.mxu0 0.0
    %1065 = vmatpush1.msra.mxu0 0.0
    %1066 = vmatprep.subr.mxu0 0.0
    %1067 = vmatpush1.msra.mxu0 0.0
    %1068 = vmatprep.subr.mxu0 0.0
    %1069 = vmatpush1.msra.mxu0 0.0
    %1070 = vmatprep.subr.mxu0 0.0
    %1071 = vmatpush1.msra.mxu0 0.0
    %1072 = vmatprep.subr.mxu0 0.0
    %1073 = vmatpush1.msra.mxu0 0.0
    %1074 = vmatprep.subr.mxu0 0.0
    %1075 = vmatpush1.msra.mxu0 0.0
    %1076 = vmatprep.subr.mxu0 0.0
    %1077 = vmatpush1.msra.mxu0 0.0
    %1078 = vmatprep.subr.mxu0 0.0
    %1079 = vmatpush1.msra.mxu0 0.0
    %1080 = vmatprep.subr.mxu0 0.0
    %1081 = vmatpush1.msra.mxu0 0.0
    %1082 = vmatprep.subr.mxu0 0.0
    %1083 = vmatpush1.msra.mxu0 0.0
    %1084 = vmatprep.subr.mxu0 0.0
    %1085 = vmatpush1.msra.mxu0 0.0
    %1086 = vmatprep.subr.mxu0 0.0
    %1087 = vmatpush1.msra.mxu0 0.0
    %1088 = vmatprep.subr.mxu0 0.0
    %1089 = vmatpush1.msra.mxu0 0.0
    %1090 = vmatprep.subr.mxu0 0.0
    %1091 = vmatpush1.msra.mxu0 0.0
    %1092 = vmatprep.subr.mxu0 0.0
    %1093 = vmatpush1.msra.mxu0 0.0
    %1094 = vmatprep.subr.mxu0 0.0
    %1095 = vmatpush1.msra.mxu0 0.0
    %1096 = vmatprep.subr.mxu0 0.0
    %1097 = vmatpush1.msra.mxu0 0.0
    %1098 = vmatprep.subr.mxu0 0.0
    %1099 = vmatpush1.msra.mxu0 0.0
    %1100 = vmatprep.subr.mxu0 0.0
    %1101 = vmatpush1.msra.mxu0 0.0
    %1102 = vmatprep.subr.mxu0 0.0
    %1103 = vmatpush1.msra.mxu0 0.0
    %1104 = vmatprep.subr.mxu0 0.0
    %1105 = vmatpush1.msra.mxu0 0.0
    %1106 = vmatprep.subr.mxu0 0.0
    %1107 = vmatpush1.msra.mxu0 0.0
    %1108 = vmatprep.subr.mxu0 0.0
    %1109 = vmatpush1.msra.mxu0 0.0
    %1110 = vmatprep.subr.mxu0 0.0
    %1111 = vmatpush1.msra.mxu0 0.0
    %1112 = vmatprep.subr.mxu0 0.0
    %1113 = vmatpush1.msra.mxu0 0.0
    %1114 = vmatprep.subr.mxu0 0.0
    %1115 = vmatpush1.msra.mxu0 0.0
    %1116 = vmatprep.subr.mxu0 0.0
    %1117 = vmatpush1.msra.mxu0 0.0
    %1118 = vmatprep.subr.mxu0 0.0
    %1119 = vmatpush1.msra.mxu0 0.0
    %1120 = vmatprep.mubr.f32.mxu0 0.0
    %1121 = vmatmul.mubr.f32.gmra.mrb[0].mxu0 %v1054
    %v1122 = vpop.f32.mrb[0].mxu0
    %v1123 = vadd.f32 %v1050, %v1122
    %v1124 = vpop.f32.mrb[0].mxu0
    %1125 = vdwg.mxu0
    %vm1126 = vcmask 74752
    %1127 = vst.msk [vmem:[#allocation2] sm:$0x3] %vm1126, %v1123
    // Predicated region
    $region34: #{decoder_forward.1} parent=1 // pred_check
      _
    $region35: #{decoder_forward.1} parent=1 // pred_check_branch
      %1129 = sbr.rel (0) target = $region37
    $region36: #{decoder_forward.1} parent=1 // pred_region
      _
    $region37: #{decoder_forward.1} parent=1 // pred_fallthru
      _
    // Predicated region
    $region38: #{decoder_forward.1} parent=1 // pred_check
      _
    $region39: #{decoder_forward.1} parent=1 // pred_check_branch
      %1131 = sbr.rel (0) target = $region41
    $region40: #{decoder_forward.1} parent=1 // pred_region
      %s1133 = ssub.s32 32, 32
      %1134 = vsyncadd [#allocation3], %s1133
      %s1136 = sshll.u32 [#allocation2], 4
      %s1137 = int_to_ptr.vmem [resolvable:$true] %s1136
      %1139 = dma.vmem_to_hbm [thread:$0]  %s1137, 32, %s9, [#allocation3]
    $region41: #{decoder_forward.1} parent=1 // pred_fallthru
      _
    // Predicated region
    $region42: #{decoder_forward.1} parent=1 // pred_check
      _
    $region43: #{decoder_forward.1} parent=1 // pred_check_branch
      %1141 = sbr.rel (0) target = $region45
    $region44: #{decoder_forward.1} parent=1 // pred_region
      _
    $region45: #{decoder_forward.1} parent=1 // pred_fallthru
      _
    // Predicated region
    $region46: #{decoder_forward.1} parent=1 // pred_check
      _
    $region47: #{decoder_forward.1} parent=1 // pred_check_branch
      %1143 = sbr.rel (0) target = $region49
    $region48: #{decoder_forward.1} parent=1 // pred_region
      %1144 = dma.done [#allocation3], 32
    $region49: #{decoder_forward.1} parent=1 // pred_fallthru
      _
    %1145 = vsyncpa [#allocation3], 1

</llo_original>
